<compile_context>
chip_gen: v5e
topology: v5e:2x2
jax: 0.10.0
libtpu: 0.0.40
codegen_flags: <defaults>
</compile_context>

<pallas_src>
import jax
import jax.numpy as jnp
from jax.experimental import pallas as pl
from jax.experimental.pallas import tpu as pltpu

_C1 = 0.7978845608028654  # sqrt(2/pi)
_C2 = _C1 * 0.044715

_MiB = 1024 * 1024


def gelu_kernel(x_ref, o_ref):
    x = x_ref[...].astype(jnp.float32)
    inner = x * (_C1 + _C2 * x * x)
    h = 0.5 * x
    o_ref[...] = (h + h * jnp.tanh(inner)).astype(o_ref.dtype)


def _round_up(v, m):
    return -(-v // m) * m


def _choose_row_tile(rows, lane, itemsize, target_tile_bytes):
    """Pick a row tile: big (HBM roofline), vreg-aligned, and megacore-friendly."""
    sub = max(8, 32 // itemsize)  # 8 rows f32, 16 bf16, 32 int8/fp8 per vreg group
    max_rt = max(sub, (target_tile_bytes // (lane * itemsize)) // sub * sub)
    rows_rounded = _round_up(rows, sub)
    row_tile = min(max_rt, rows_rounded)

    if rows < 4 * sub:
        return row_tile

    # v7x megacore: prefer an even block count >= 4 (>= 2 pipelined steps per TC),
    # using the largest feasible tile.
    n0 = max(4, _round_up(-(-rows // max_rt), 2))
    for nb in range(n0, n0 + 16, 2):
        rt = min(max_rt, max(sub, _round_up(-(-rows // nb), sub)))
        actual = -(-rows // rt)
        if actual >= 4 and actual % 2 == 0:
            return rt

    # Fallback: at least 4 blocks, even-ness best effort.
    return min(row_tile, max(sub, (rows // 4) // sub * sub))


def gelu_pallas(x):
    """Elementwise tanh-GELU. Accepts any shape; compute happens in a Pallas kernel."""
    orig_shape = x.shape
    orig_dtype = x.dtype
    n = x.size
    if n == 0:
        return x

    # --- Lane-dense 2D layout: (rows, lane) with lane a wide multiple of 128. ---
    lane = None
    for cand in (4096, 2048, 1024, 512, 256, 128):
        if n % cand == 0:
            lane = cand
            break

    pad_tail = 0
    if lane is None:
        # Degenerate case: total element count not a multiple of 128.
        # Pad the flat 1-D array minimally (rare for real activation shapes).
        lane = 128
        pad_tail = (-n) % lane
        x2 = jnp.pad(x.reshape(-1), (0, pad_tail)).reshape(-1, lane)
    else:
        x2 = x.reshape(-1, lane)  # contiguous row-major reshape: layout plumbing only

    rows = x2.shape[0]
    itemsize = jnp.dtype(orig_dtype).itemsize

    # --- Generation-aware tile budget. ---
    vmem_cap = 64 * _MiB  # conservative default (v7x per-TC VMEM)
    try:
        vmem_cap = int(pltpu.get_tpu_info().vmem_capacity_bytes)
    except Exception:
        pass
    # v5e/v6e (128 MiB VMEM): 16 MiB tiles; v7x (64 MiB): 8 MiB tiles.
    target_tile_bytes = 16 * _MiB if vmem_cap >= 96 * _MiB else 8 * _MiB

    row_tile = _choose_row_tile(rows, lane, itemsize, target_tile_bytes)
    tile_bytes = row_tile * lane * itemsize

    # Double-buffered input + output = 4 tiles; add headroom; cap at 3/4 physical VMEM.
    vmem_limit = int(min(vmem_cap * 3 // 4,
                         max(32 * _MiB, 4 * tile_bytes + 8 * _MiB)))

    grid = (pl.cdiv(rows, row_tile),)

    out = pl.pallas_call(
        gelu_kernel,
        out_shape=jax.ShapeDtypeStruct(x2.shape, orig_dtype),
        grid_spec=pltpu.PrefetchScalarGridSpec(
            num_scalar_prefetch=0,
            grid=grid,
            in_specs=[pl.BlockSpec((row_tile, lane), lambda i: (i, 0))],
            out_specs=pl.BlockSpec((row_tile, lane), lambda i: (i, 0)),
        ),
        compiler_params=pltpu.CompilerParams(
            dimension_semantics=("parallel",),
            vmem_limit_bytes=vmem_limit,
        ),
        cost_estimate=pl.CostEstimate(
            flops=8 * n,
            transcendentals=n,
            bytes_accessed=2 * n * itemsize,
        ),
    )(x2)

    if pad_tail:
        out = out.reshape(-1)[:n]
    return out.reshape(orig_shape)


def gelu_ref(x):
    xf = x.astype(jnp.float32)
    return (0.5 * xf * (1.0 + jnp.tanh(jnp.sqrt(2.0 / jnp.pi)
                                       * (xf + 0.044715 * xf ** 3)))).astype(x.dtype)


if __name__ == "__main__":
    key = jax.random.PRNGKey(0)

    # Small shape consistent with an LLM feed-forward activation: [batch, seq, hidden]
    x = jax.random.normal(key, (2, 8, 32), dtype=jnp.float32)
    y = gelu_pallas(x)
    jax.block_until_ready(y)
    y_ref = gelu_ref(x)
    assert y.shape == x.shape and y.dtype == x.dtype
    assert jnp.allclose(y, y_ref, atol=1e-5, rtol=1e-5)

    # Degenerate shape exercising the pad-tail path (size not a multiple of 128).
    x_odd = jax.random.normal(jax.random.PRNGKey(1), (3, 7, 5), dtype=jnp.float32)
    y_odd = gelu_pallas(x_odd)
    jax.block_until_ready(y_odd)
    assert y_odd.shape == x_odd.shape and y_odd.dtype == x_odd.dtype
    assert jnp.allclose(y_odd, gelu_ref(x_odd), atol=1e-5, rtol=1e-5)

    print("KERNEL_OK")
</pallas_src>

<mosaic_0001>
module attributes {stable_mosaic.version = 11 : i64} {
  func.func @gelu_kernel(%arg0: i32, %arg1: memref<8x512xf32, #tpu.memory_space<vmem>>, %arg2: memref<8x512xf32, #tpu.memory_space<vmem>>) attributes {dimension_semantics = [#tpu.dimension_semantics<parallel>], iteration_bounds = array<i64: 1>, scalar_prefetch = 0 : i64, scratch_operands = 0 : i64, tpu.core_type = #tpu.core_type<tc>, window_params = [{transform_indices = @transform_0, window_bounds = array<i64: 8, 512>}, {transform_indices = @transform_1, window_bounds = array<i64: 8, 512>}]} {
    %c0 = arith.constant 0 : index
    %c0_0 = arith.constant 0 : index
    %0 = vector.load %arg1[%c0, %c0_0] : memref<8x512xf32, #tpu.memory_space<vmem>>, vector<8x512xf32>
    %cst = arith.constant 0.0356774069 : f32
    %1 = vector.broadcast %cst : f32 to vector<8x512xf32>
    %2 = arith.mulf %1, %0 : vector<8x512xf32>
    %3 = arith.mulf %2, %0 : vector<8x512xf32>
    %cst_1 = arith.constant 0.797884583 : f32
    %4 = vector.broadcast %cst_1 : f32 to vector<8x512xf32>
    %5 = arith.addf %4, %3 : vector<8x512xf32>
    %6 = arith.mulf %0, %5 : vector<8x512xf32>
    %cst_2 = arith.constant 5.000000e-01 : f32
    %7 = vector.broadcast %cst_2 : f32 to vector<8x512xf32>
    %8 = arith.mulf %7, %0 : vector<8x512xf32>
    %9 = math.tanh %6 : vector<8x512xf32>
    %10 = arith.mulf %8, %9 : vector<8x512xf32>
    %11 = arith.addf %8, %10 : vector<8x512xf32>
    %c0_3 = arith.constant 0 : index
    %c0_4 = arith.constant 0 : index
    %12 = vector.load %arg2[%c0_3, %c0_4] : memref<8x512xf32, #tpu.memory_space<vmem>>, vector<8x512xf32>
    tpu.vector_store %arg2[%c0_3, %c0_4], %11 {strides = array<i32>} : memref<8x512xf32, #tpu.memory_space<vmem>>, vector<8x512xf32>,
    return
  }
  func.func @transform_0(%arg0: i32) -> (i32, i32) {
    %c0_i32 = arith.constant 0 : i32
    %c0_i32_0 = arith.constant 0 : i32
    return %arg0, %c0_i32 : i32, i32
  }
  func.func @transform_1(%arg0: i32) -> (i32, i32) {
    %c0_i32 = arith.constant 0 : i32
    %c0_i32_0 = arith.constant 0 : i32
    return %arg0, %c0_i32 : i32, i32
  }
}

</mosaic_0001>

<llo_original>
// kernel: tpu_custom_call.1
$region0: #{tpu_custom_call.1}
  #allocation0 [shape = 'u32[]', space=smem, size = 0x4, offset = 0x4, fixed_abs, tag = 'smem constant byte address 0x4 - core index']
  #allocation1 [shape = 'u32[72,128]{1,0:T(1,128)}', space=vmem, size = 0x9000, scoped, tag = 'internal scratch']
  %s0 = inlined_call_operand.hbm [shape: f32[1,512], index: 0, kind: input, shape index: {}]
  %s1 = inlined_call_operand.hbm [shape: f32[1,512], index: 1, kind: output, shape index: {}]
  %s2 = sld [smem:[#allocation0]]
  $region18: #{tpu_custom_call.1} parent=0
    _
  %s4 = ssub.s32 1, %s2
  %s5 = scalar_select 0, %s4, %s2
  $region1: #{tpu_custom_call.1} parent=0
    #allocation2 [shape = 'u8[16384]{0}', space=vmem, size = 0x4000, scoped, tag = 'input window, operand 0, single buffered']
    #allocation3 [shape = 's32[1]{0}', space=sflag, size = 0x4, scoped, tag = 'scoped memory for tpu_custom_call.1']
    #allocation4 [shape = 's32[1]{0}', space=sflag, size = 0x4, scoped, tag = 'scoped memory for tpu_custom_call.1']
    #allocation5 [shape = 'u8[16384]{0}', space=vmem, size = 0x4000, scoped, tag = 'output window, operand 0, single buffered']
    %6 = vsyncpa [#allocation3], 0
    %7 = vsyncpa [#allocation4], 0
    // Predicated region
    $region2: #{tpu_custom_call.1} parent=1 // pred_check
      _
    $region3: #{tpu_custom_call.1} parent=1 // pred_check_branch
      %9 = sbr.rel (0) target = $region5
    $region4: #{tpu_custom_call.1} parent=1 // pred_region
      %11 = vsyncadd [#allocation3], 448
      %s12 = sshll.u32 %s0, 4
      %s13 = int_to_ptr.hbm [resolvable:$true] %s12
      %s14 = sshll.u32 [#allocation2], 4
      %s15 = int_to_ptr.vmem [resolvable:$true] %s14
      %20 = dma.hbm_to_vmem [thread:$0]  %s13, 64, %s15, [#allocation3], 64, 64, 4
    $region5: #{tpu_custom_call.1} parent=1 // pred_fallthru
      _
    // Predicated region
    $region6: #{tpu_custom_call.1} parent=1 // pred_check
      _
    $region7: #{tpu_custom_call.1} parent=1 // pred_check_branch
      %22 = sbr.rel (0) target = $region9
    $region8: #{tpu_custom_call.1} parent=1 // pred_region
      %24 = dma.done [#allocation3], 512
    $region9: #{tpu_custom_call.1} parent=1 // pred_fallthru
      _
    %v25 = vld [vmem:[#allocation2] sm:$0xf]
    %v26 = vld [vmem:[#allocation2 + $0x4] sm:$0xf]
    %v27 = vld [vmem:[#allocation2 + $0x8] sm:$0xf]
    %v28 = vld [vmem:[#allocation2 + $0xc] sm:$0xf]
    %v29 = vld [vmem:[#allocation2 + $0x10] sm:$0xf]
    %v30 = vld [vmem:[#allocation2 + $0x14] sm:$0xf]
    %v31 = vld [vmem:[#allocation2 + $0x18] sm:$0xf]
    %v32 = vld [vmem:[#allocation2 + $0x1c] sm:$0xf]
    %v33 = vmul.f32 %v25, 0.035677407
    %v34 = vmul.f32 %v26, 0.035677407
    %v35 = vmul.f32 %v27, 0.035677407
    %v36 = vmul.f32 %v28, 0.035677407
    %v37 = vmul.f32 %v29, 0.035677407
    %v38 = vmul.f32 %v30, 0.035677407
    %v39 = vmul.f32 %v31, 0.035677407
    %v40 = vmul.f32 %v32, 0.035677407
    %v41 = vmul.f32 %v33, %v25
    %v42 = vmul.f32 %v34, %v26
    %v43 = vmul.f32 %v35, %v27
    %v44 = vmul.f32 %v36, %v28
    %v45 = vmul.f32 %v37, %v29
    %v46 = vmul.f32 %v38, %v30
    %v47 = vmul.f32 %v39, %v31
    %v48 = vmul.f32 %v40, %v32
    %v49 = vadd.f32 %v41, 0.7978846
    %v50 = vadd.f32 %v42, 0.7978846
    %v51 = vadd.f32 %v43, 0.7978846
    %v52 = vadd.f32 %v44, 0.7978846
    %v53 = vadd.f32 %v45, 0.7978846
    %v54 = vadd.f32 %v46, 0.7978846
    %v55 = vadd.f32 %v47, 0.7978846
    %v56 = vadd.f32 %v48, 0.7978846
    %v57 = vmul.f32 %v25, %v49
    %v58 = vmul.f32 %v26, %v50
    %v59 = vmul.f32 %v27, %v51
    %v60 = vmul.f32 %v28, %v52
    %v61 = vmul.f32 %v29, %v53
    %v62 = vmul.f32 %v30, %v54
    %v63 = vmul.f32 %v31, %v55
    %v64 = vmul.f32 %v32, %v56
    %v65 = vmul.f32 %v25, 0.5
    %v66 = vmul.f32 %v26, 0.5
    %v67 = vmul.f32 %v27, 0.5
    %v68 = vmul.f32 %v28, 0.5
    %v69 = vmul.f32 %v29, 0.5
    %v70 = vmul.f32 %v30, 0.5
    %v71 = vmul.f32 %v31, 0.5
    %v72 = vmul.f32 %v32, 0.5
    %v73 = vtanh.pop %v57
    %v74 = vtanh.pop %v58
    %v75 = vtanh.pop %v59
    %v76 = vtanh.pop %v60
    %v77 = vtanh.pop %v61
    %v78 = vtanh.pop %v62
    %v79 = vtanh.pop %v63
    %v80 = vtanh.pop %v64
    %v81 = vmul.f32 %v65, %v73
    %v82 = vmul.f32 %v66, %v74
    %v83 = vmul.f32 %v67, %v75
    %v84 = vmul.f32 %v68, %v76
    %v85 = vmul.f32 %v69, %v77
    %v86 = vmul.f32 %v70, %v78
    %v87 = vmul.f32 %v71, %v79
    %v88 = vmul.f32 %v72, %v80
    %v89 = vadd.f32 %v65, %v81
    %v90 = vadd.f32 %v66, %v82
    %v91 = vadd.f32 %v67, %v83
    %v92 = vadd.f32 %v68, %v84
    %v93 = vadd.f32 %v69, %v85
    %v94 = vadd.f32 %v70, %v86
    %v95 = vadd.f32 %v71, %v87
    %v96 = vadd.f32 %v72, %v88
    %v97 = vlaneseq
    %vm98 = vcmp.ge.s32.totalorder %v97, 0
    %vm99 = vcmp.lt.s32.totalorder %v97, 512
    %vm100 = vmand %vm98, %vm99
    %101 = vst.msk [vmem:[#allocation5] sm:$0xf] %vm100, %v89
    %102 = vst.msk [vmem:[#allocation5 + $0x4] sm:$0xf] %vm100, %v90
    %103 = vst.msk [vmem:[#allocation5 + $0x8] sm:$0xf] %vm100, %v91
    %104 = vst.msk [vmem:[#allocation5 + $0xc] sm:$0xf] %vm100, %v92
    %105 = vst.msk [vmem:[#allocation5 + $0x10] sm:$0xf] %vm100, %v93
    %106 = vst.msk [vmem:[#allocation5 + $0x14] sm:$0xf] %vm100, %v94
    %107 = vst.msk [vmem:[#allocation5 + $0x18] sm:$0xf] %vm100, %v95
    %108 = vst.msk [vmem:[#allocation5 + $0x1c] sm:$0xf] %vm100, %v96
    // Predicated region
    $region10: #{tpu_custom_call.1} parent=1 // pred_check
      _
    $region11: #{tpu_custom_call.1} parent=1 // pred_check_branch
      %110 = sbr.rel (0) target = $region13
    $region12: #{tpu_custom_call.1} parent=1 // pred_region
      %112 = vsyncadd [#allocation4], 448
      %s113 = sshll.u32 [#allocation5], 4
      %s114 = int_to_ptr.vmem [resolvable:$true] %s113
      %s115 = sshll.u32 %s1, 4
      %s116 = int_to_ptr.hbm [resolvable:$true] %s115
      %121 = dma.vmem_to_hbm [thread:$0]  %s114, 64, %s116, [#allocation4], 64, 64, 4
    $region13: #{tpu_custom_call.1} parent=1 // pred_fallthru
      _
    // Predicated region
    $region14: #{tpu_custom_call.1} parent=1 // pred_check
      _
    $region15: #{tpu_custom_call.1} parent=1 // pred_check_branch
      %123 = sbr.rel (0) target = $region17
    $region16: #{tpu_custom_call.1} parent=1 // pred_region
      %125 = dma.done [#allocation4], 512
    $region17: #{tpu_custom_call.1} parent=1 // pred_fallthru
      _
    %126 = vsyncpa [#allocation3], 1
    %127 = vsyncpa [#allocation4], 1

</llo_original>
